<compile_context>
chip_gen: v5e
topology: v5e:2x2
jax: 0.10.0
libtpu: 0.0.40
codegen_flags: <defaults>
</compile_context>

<pallas_src>
import functools

import jax
import jax.numpy as jnp
from jax import lax
from jax.experimental import pallas as pl
from jax.experimental.pallas import tpu as pltpu


def _ca_fused_kernel(x_ref, bmask_ref, vmask_ref, w1_ref, b1_ref, w2_ref,
                     b2_ref, wd1_ref, bd1_ref, wd2_ref, bd2_ref, o_ref,
                     *, H, W, C, matmul_dtype):
    # x_ref    : (1, C, H*W)  one batch element, channel-major, lane-dense
    # bmask_ref: (9, H*W)     0/1 border masks for input taps, t=(dy+1)*3+(dx+1)
    # vmask_ref: (H*W, 9)     0/1 valid-region masks (transposed) for the pool
    # w1_ref   : (C, 9*C)     conv1 im2col weights (cols = t*C + cin)
    # w2_ref   : (C, 9*C)     conv2 im2col weights (cols = t*C + cin)
    # b1_ref, b2_ref, bd2_ref : (C, 1);  wd1_ref: (Cr, C);  bd1_ref: (Cr, 1)
    # wd2_ref  : (C, Cr)
    # o_ref    : (1, C, H*W)
    HW = H * W
    x_f = x_ref[0]                              # (C, HW) f32 (for residual)
    x_mm = x_f.astype(matmul_dtype)
    bmask = bmask_ref[...].astype(matmul_dtype)  # (9, HW)

    # ---- conv1 (3x3, padding=1) as ONE im2col matmul, K = 9*C --------------
    # Tap t shifted image: out[:, p] = x[:, p + s] (zero when out of bounds).
    # Circular pltpu.roll by (-s) mod HW gives x[:, (p+s) mod HW]; the border
    # mask zeroes exactly the positions where (h+dy, w+dx) is out of bounds,
    # so any wrapped values are killed.  XLU roll slot ~free next to VPU/MXU.
    taps = [(dy, dx) for dy in (-1, 0, 1) for dx in (-1, 0, 1)]
    cols = []
    for t, (dy, dx) in enumerate(taps):
        s = dy * W + dx
        if s == 0:
            cols.append(x_mm)                   # center tap: mask is all-ones
        else:
            win = pltpu.roll(x_mm, shift=(-s) % HW, axis=1)
            cols.append(win * bmask[t:t + 1, :])
    patches = jnp.concatenate(cols, axis=0)     # (9*C, HW), lane-dense
    y1 = jnp.dot(w1_ref[...], patches,
                 preferred_element_type=jnp.float32)        # (C, HW) f32
    y1 = jnp.maximum(y1 + b1_ref[...], 0.0)

    # ---- conv2 (3x3) + global average pool, via linearity -------------------
    # mean_{h,w} conv2(zero_pad(y1)) = (1/HW) * w2_im2col @ [per-tap sums] + b2
    # Per-tap valid-region sums of y1 in ONE MXU matmul against 0/1 masks.
    tap_sums = jnp.dot(y1, vmask_ref[...],
                       preferred_element_type=jnp.float32)  # (C, 9)
    # Reorder (C, 9) -> (9*C, 1) column with index t*C + cin (tiny slices).
    s_col = jnp.concatenate([tap_sums[:, t:t + 1] for t in range(9)], axis=0)
    pooled = (jnp.dot(w2_ref[...], s_col,
                      preferred_element_type=jnp.float32)
              * (1.0 / HW) + b2_ref[...])                   # (C, 1)

    # ---- conv_du: 1x1 -> ReLU -> 1x1 -> sigmoid, then gated residual --------
    h1 = jnp.maximum(
        jnp.dot(wd1_ref[...], pooled, preferred_element_type=jnp.float32)
        + bd1_ref[...], 0.0)                                # (Cr, 1)
    z = jax.nn.sigmoid(
        jnp.dot(wd2_ref[...], h1, preferred_element_type=jnp.float32)
        + bd2_ref[...])                                     # (C, 1)
    gate = z * pooled                                       # (C, 1)
    o_ref[0] = (x_f + gate).astype(o_ref.dtype)             # lane-dense store


def ca_layer_forward(x_nchw, params, matmul_dtype=jnp.float32):
    """CALayer forward. x_nchw: (B, C, H, W). Returns (B, C, H, W)."""
    w1, b1, w2, b2, wd1, bd1, wd2, bd2 = params
    B, C, H, W = x_nchw.shape
    Cr = wd1.shape[0]
    HW = H * W

    # Stay channel-major: (B, C, H, W) -> (B, C, H*W) is a free reshape
    # (no NCHW<->NHWC transpose passes over HBM).
    x_flat = x_nchw.reshape(B, C, HW)

    # 0/1 masks for the 9 taps of a 3x3 SAME conv, tap order t=(dy+1)*3+(dx+1):
    #   border_masks[t, p] = 1 iff the input position (h+dy, w+dx) is in-bounds
    #   valid_masks_T[p, t] = 1 iff p lies in the region summed for tap t of
    #                         the pooled conv2 (i.e. (h-dy, w-dx) in-bounds)
    hh = jnp.arange(H, dtype=jnp.int32).reshape(H, 1)
    ww = jnp.arange(W, dtype=jnp.int32).reshape(1, W)
    border_rows, valid_cols = [], []
    for dy in (-1, 0, 1):
        for dx in (-1, 0, 1):
            bm = ((hh + dy >= 0) & (hh + dy < H) &
                  (ww + dx >= 0) & (ww + dx < W))
            border_rows.append(bm.reshape(1, HW))
            vm = ((hh - dy >= 0) & (hh - dy < H) &
                  (ww - dx >= 0) & (ww - dx < W))
            valid_cols.append(vm.reshape(HW, 1))
    border_masks = jnp.concatenate(border_rows, axis=0).astype(jnp.float32)
    valid_masks_T = jnp.concatenate(valid_cols, axis=1).astype(jnp.float32)

    # Weight re-layouts (tiny, once per call):
    #   3x3 convs -> (Cout, 9*Cin) im2col matrices, columns ordered t*Cin+cin;
    #   1x1 convs -> (out, in) matrices; biases -> column vectors.
    w1_mat = jnp.transpose(w1, (0, 2, 3, 1)).reshape(C, 9 * C).astype(matmul_dtype)
    w2_mat = jnp.transpose(w2, (0, 2, 3, 1)).reshape(C, 9 * C).astype(jnp.float32)
    wd1_mat = wd1[:, :, 0, 0].astype(jnp.float32)          # (Cr, C)
    wd2_mat = wd2[:, :, 0, 0].astype(jnp.float32)          # (C, Cr)
    b1_c = b1.reshape(C, 1).astype(jnp.float32)
    b2_c = b2.reshape(C, 1).astype(jnp.float32)
    bd1_c = bd1.reshape(Cr, 1).astype(jnp.float32)
    bd2_c = bd2.reshape(C, 1).astype(jnp.float32)

    kernel = functools.partial(_ca_fused_kernel, H=H, W=W, C=C,
                               matmul_dtype=matmul_dtype)

    out = pl.pallas_call(
        kernel,
        out_shape=jax.ShapeDtypeStruct((B, C, HW), x_nchw.dtype),
        grid=(B,),
        in_specs=[
            pl.BlockSpec((1, C, HW), lambda b: (b, 0, 0)),   # x (per batch)
            pl.BlockSpec((9, HW), lambda b: (0, 0)),         # border masks
            pl.BlockSpec((HW, 9), lambda b: (0, 0)),         # valid masks^T
            pl.BlockSpec((C, 9 * C), lambda b: (0, 0)),      # conv1 weights
            pl.BlockSpec((C, 1), lambda b: (0, 0)),          # conv1 bias
            pl.BlockSpec((C, 9 * C), lambda b: (0, 0)),      # conv2 weights
            pl.BlockSpec((C, 1), lambda b: (0, 0)),          # conv2 bias
            pl.BlockSpec((Cr, C), lambda b: (0, 0)),         # conv_du w1
            pl.BlockSpec((Cr, 1), lambda b: (0, 0)),         # conv_du b1
            pl.BlockSpec((C, Cr), lambda b: (0, 0)),         # conv_du w2
            pl.BlockSpec((C, 1), lambda b: (0, 0)),          # conv_du b2
        ],
        out_specs=pl.BlockSpec((1, C, HW), lambda b: (b, 0, 0)),
        compiler_params=pltpu.CompilerParams(
            dimension_semantics=("parallel",)),
    )(x_flat, border_masks, valid_masks_T, w1_mat, b1_c, w2_mat, b2_c,
      wd1_mat, bd1_c, wd2_mat, bd2_c)

    return out.reshape(B, C, H, W)


def ref_forward(x, params):
    """Pure-JAX reference matching the PyTorch module (NCHW)."""
    w1, b1, w2, b2, wd1, bd1, wd2, bd2 = params
    dn = ("NCHW", "OIHW", "NCHW")
    y = lax.conv_general_dilated(x, w1, (1, 1), "SAME", dimension_numbers=dn)
    y = jnp.maximum(y + b1[None, :, None, None], 0.0)
    y = lax.conv_general_dilated(y, w2, (1, 1), "SAME", dimension_numbers=dn)
    y = y + b2[None, :, None, None]
    y = jnp.mean(y, axis=(2, 3), keepdims=True)            # (B, C, 1, 1)
    yf = y[:, :, 0, 0]
    h = jnp.maximum(yf @ wd1[:, :, 0, 0].T + bd1, 0.0)
    z = jax.nn.sigmoid(h @ wd2[:, :, 0, 0].T + bd2)
    return z[:, :, None, None] * y + x


if __name__ == "__main__":
    B, C, H, W = 2, 8, 16, 16
    reduction = 4
    Cr = C // reduction

    key = jax.random.PRNGKey(0)
    ks = jax.random.split(key, 9)
    s = 0.1
    w1 = jax.random.normal(ks[0], (C, C, 3, 3), jnp.float32) * s
    b1 = jax.random.normal(ks[1], (C,), jnp.float32) * s
    w2 = jax.random.normal(ks[2], (C, C, 3, 3), jnp.float32) * s
    b2 = jax.random.normal(ks[3], (C,), jnp.float32) * s
    wd1 = jax.random.normal(ks[4], (Cr, C, 1, 1), jnp.float32) * s
    bd1 = jax.random.normal(ks[5], (Cr,), jnp.float32) * s
    wd2 = jax.random.normal(ks[6], (C, Cr, 1, 1), jnp.float32) * s
    bd2 = jax.random.normal(ks[7], (C,), jnp.float32) * s
    x = jax.random.normal(ks[8], (B, C, H, W), jnp.float32)
    params = (w1, b1, w2, b2, wd1, bd1, wd2, bd2)

    out = jax.jit(ca_layer_forward)(x, params)
    out = jax.block_until_ready(out)

    ref = ref_forward(x, params)
    assert out.shape == (B, C, H, W)
    err = float(jnp.max(jnp.abs(out - ref)))
    if err > 1e-4:
        raise ValueError(f"Pallas/reference mismatch: max abs err = {err}")
    print("KERNEL_OK")
</pallas_src>

<mosaic_0001>
module attributes {stable_mosaic.version = 11 : i64} {
  func.func @_ca_fused_kernel(%arg0: i32, %arg1: memref<1x8x256xf32, #tpu.memory_space<vmem>>, %arg2: memref<9x256xf32, #tpu.memory_space<vmem>>, %arg3: memref<256x9xf32, #tpu.memory_space<vmem>>, %arg4: memref<8x72xf32, #tpu.memory_space<vmem>>, %arg5: memref<8x1xf32, #tpu.memory_space<vmem>>, %arg6: memref<8x72xf32, #tpu.memory_space<vmem>>, %arg7: memref<8x1xf32, #tpu.memory_space<vmem>>, %arg8: memref<2x8xf32, #tpu.memory_space<vmem>>, %arg9: memref<2x1xf32, #tpu.memory_space<vmem>>, %arg10: memref<8x2xf32, #tpu.memory_space<vmem>>, %arg11: memref<8x1xf32, #tpu.memory_space<vmem>>, %arg12: memref<1x8x256xf32, #tpu.memory_space<vmem>>) attributes {dimension_semantics = [#tpu.dimension_semantics<parallel>], iteration_bounds = array<i64: 2>, scalar_prefetch = 0 : i64, scratch_operands = 0 : i64, tpu.core_type = #tpu.core_type<tc>, window_params = [{transform_indices = @transform_0, window_bounds = array<i64: 1, 8, 256>}, {pipeline_mode = #tpu.pipeline_mode<synchronous>, transform_indices = @transform_1, window_bounds = array<i64: 9, 256>}, {pipeline_mode = #tpu.pipeline_mode<synchronous>, transform_indices = @transform_2, window_bounds = array<i64: 256, 9>}, {pipeline_mode = #tpu.pipeline_mode<synchronous>, transform_indices = @transform_3, window_bounds = array<i64: 8, 72>}, {pipeline_mode = #tpu.pipeline_mode<synchronous>, transform_indices = @transform_4, window_bounds = array<i64: 8, 1>}, {pipeline_mode = #tpu.pipeline_mode<synchronous>, transform_indices = @transform_5, window_bounds = array<i64: 8, 72>}, {pipeline_mode = #tpu.pipeline_mode<synchronous>, transform_indices = @transform_6, window_bounds = array<i64: 8, 1>}, {pipeline_mode = #tpu.pipeline_mode<synchronous>, transform_indices = @transform_7, window_bounds = array<i64: 2, 8>}, {pipeline_mode = #tpu.pipeline_mode<synchronous>, transform_indices = @transform_8, window_bounds = array<i64: 2, 1>}, {pipeline_mode = #tpu.pipeline_mode<synchronous>, transform_indices = @transform_9, window_bounds = array<i64: 8, 2>}, {pipeline_mode = #tpu.pipeline_mode<synchronous>, transform_indices = @transform_10, window_bounds = array<i64: 8, 1>}, {transform_indices = @transform_11, window_bounds = array<i64: 1, 8, 256>}]} {
    %c0 = arith.constant 0 : index
    %c0_0 = arith.constant 0 : index
    %c0_1 = arith.constant 0 : index
    %0 = vector.load %arg1[%c0, %c0_0, %c0_1] : memref<1x8x256xf32, #tpu.memory_space<vmem>>, vector<1x8x256xf32>
    %1 = vector.shape_cast %0 : vector<1x8x256xf32> to vector<8x256xf32>
    %c0_2 = arith.constant 0 : index
    %c0_3 = arith.constant 0 : index
    %2 = vector.load %arg2[%c0_2, %c0_3] : memref<9x256xf32, #tpu.memory_space<vmem>>, vector<9x256xf32>
    %c17_i32 = arith.constant 17 : i32
    %3 = tpu.dynamic_rotate %1 by %c17_i32 dim 1 : vector<8x256xf32>, i32 -> vector<8x256xf32>
    %4 = vector.extract_strided_slice %2 {offsets = [0, 0], sizes = [1, 256], strides = [1, 1]} : vector<9x256xf32> to vector<1x256xf32>
    %5 = vector.broadcast %4 : vector<1x256xf32> to vector<8x256xf32>
    %6 = arith.mulf %3, %5 : vector<8x256xf32>
    %c16_i32 = arith.constant 16 : i32
    %7 = tpu.dynamic_rotate %1 by %c16_i32 dim 1 : vector<8x256xf32>, i32 -> vector<8x256xf32>
    %8 = vector.extract_strided_slice %2 {offsets = [1, 0], sizes = [1, 256], strides = [1, 1]} : vector<9x256xf32> to vector<1x256xf32>
    %9 = vector.broadcast %8 : vector<1x256xf32> to vector<8x256xf32>
    %10 = arith.mulf %7, %9 : vector<8x256xf32>
    %c15_i32 = arith.constant 15 : i32
    %11 = tpu.dynamic_rotate %1 by %c15_i32 dim 1 : vector<8x256xf32>, i32 -> vector<8x256xf32>
    %12 = vector.extract_strided_slice %2 {offsets = [2, 0], sizes = [1, 256], strides = [1, 1]} : vector<9x256xf32> to vector<1x256xf32>
    %13 = vector.broadcast %12 : vector<1x256xf32> to vector<8x256xf32>
    %14 = arith.mulf %11, %13 : vector<8x256xf32>
    %c1_i32 = arith.constant 1 : i32
    %15 = tpu.dynamic_rotate %1 by %c1_i32 dim 1 : vector<8x256xf32>, i32 -> vector<8x256xf32>
    %16 = vector.extract_strided_slice %2 {offsets = [3, 0], sizes = [1, 256], strides = [1, 1]} : vector<9x256xf32> to vector<1x256xf32>
    %17 = vector.broadcast %16 : vector<1x256xf32> to vector<8x256xf32>
    %18 = arith.mulf %15, %17 : vector<8x256xf32>
    %c255_i32 = arith.constant 255 : i32
    %19 = tpu.dynamic_rotate %1 by %c255_i32 dim 1 : vector<8x256xf32>, i32 -> vector<8x256xf32>
    %20 = vector.extract_strided_slice %2 {offsets = [5, 0], sizes = [1, 256], strides = [1, 1]} : vector<9x256xf32> to vector<1x256xf32>
    %21 = vector.broadcast %20 : vector<1x256xf32> to vector<8x256xf32>
    %22 = arith.mulf %19, %21 : vector<8x256xf32>
    %c241_i32 = arith.constant 241 : i32
    %23 = tpu.dynamic_rotate %1 by %c241_i32 dim 1 : vector<8x256xf32>, i32 -> vector<8x256xf32>
    %24 = vector.extract_strided_slice %2 {offsets = [6, 0], sizes = [1, 256], strides = [1, 1]} : vector<9x256xf32> to vector<1x256xf32>
    %25 = vector.broadcast %24 : vector<1x256xf32> to vector<8x256xf32>
    %26 = arith.mulf %23, %25 : vector<8x256xf32>
    %c240_i32 = arith.constant 240 : i32
    %27 = tpu.dynamic_rotate %1 by %c240_i32 dim 1 : vector<8x256xf32>, i32 -> vector<8x256xf32>
    %28 = vector.extract_strided_slice %2 {offsets = [7, 0], sizes = [1, 256], strides = [1, 1]} : vector<9x256xf32> to vector<1x256xf32>
    %29 = vector.broadcast %28 : vector<1x256xf32> to vector<8x256xf32>
    %30 = arith.mulf %27, %29 : vector<8x256xf32>
    %c239_i32 = arith.constant 239 : i32
    %31 = tpu.dynamic_rotate %1 by %c239_i32 dim 1 : vector<8x256xf32>, i32 -> vector<8x256xf32>
    %32 = vector.extract_strided_slice %2 {offsets = [8, 0], sizes = [1, 256], strides = [1, 1]} : vector<9x256xf32> to vector<1x256xf32>
    %33 = vector.broadcast %32 : vector<1x256xf32> to vector<8x256xf32>
    %34 = arith.mulf %31, %33 : vector<8x256xf32>
    %35 = tpu.concatenate %6, %10, %14, %18, %1, %22, %26, %30, %34 in 0 : vector<8x256xf32>, vector<8x256xf32>, vector<8x256xf32>, vector<8x256xf32>, vector<8x256xf32>, vector<8x256xf32>, vector<8x256xf32>, vector<8x256xf32>, vector<8x256xf32> -> vector<72x256xf32>
    %c0_4 = arith.constant 0 : index
    %c0_5 = arith.constant 0 : index
    %36 = vector.load %arg4[%c0_4, %c0_5] : memref<8x72xf32, #tpu.memory_space<vmem>>, vector<8x72xf32>
    %cst = arith.constant dense<0.000000e+00> : vector<8x256xf32>
    %37 = tpu.matmul %36, %35, %cst {dimension_numbers = #tpu.dot_dimension_numbers<[1], [0], [0], [1], [0, 0, 1, 1], [], []>} : vector<8x72xf32>, vector<72x256xf32>, vector<8x256xf32> -> vector<8x256xf32>
    %c0_6 = arith.constant 0 : index
    %c0_7 = arith.constant 0 : index
    %38 = vector.load %arg5[%c0_6, %c0_7] : memref<8x1xf32, #tpu.memory_space<vmem>>, vector<8x1xf32>
    %39 = vector.broadcast %38 : vector<8x1xf32> to vector<8x256xf32>
    %40 = arith.addf %37, %39 : vector<8x256xf32>
    %cst_8 = arith.constant 0.000000e+00 : f32
    %41 = vector.broadcast %cst_8 : f32 to vector<8x256xf32>
    %42 = arith.maximumf %40, %41 : vector<8x256xf32>
    %c0_9 = arith.constant 0 : index
    %c0_10 = arith.constant 0 : index
    %43 = vector.load %arg3[%c0_9, %c0_10] : memref<256x9xf32, #tpu.memory_space<vmem>>, vector<256x9xf32>
    %cst_11 = arith.constant dense<0.000000e+00> : vector<8x9xf32>
    %44 = tpu.matmul %42, %43, %cst_11 {dimension_numbers = #tpu.dot_dimension_numbers<[1], [0], [0], [1], [0, 0, 1, 1], [], []>} : vector<8x256xf32>, vector<256x9xf32>, vector<8x9xf32> -> vector<8x9xf32>
    %45 = vector.extract_strided_slice %44 {offsets = [0, 0], sizes = [8, 1], strides = [1, 1]} : vector<8x9xf32> to vector<8x1xf32>
    %46 = vector.extract_strided_slice %44 {offsets = [0, 1], sizes = [8, 1], strides = [1, 1]} : vector<8x9xf32> to vector<8x1xf32>
    %47 = vector.extract_strided_slice %44 {offsets = [0, 2], sizes = [8, 1], strides = [1, 1]} : vector<8x9xf32> to vector<8x1xf32>
    %48 = vector.extract_strided_slice %44 {offsets = [0, 3], sizes = [8, 1], strides = [1, 1]} : vector<8x9xf32> to vector<8x1xf32>
    %49 = vector.extract_strided_slice %44 {offsets = [0, 4], sizes = [8, 1], strides = [1, 1]} : vector<8x9xf32> to vector<8x1xf32>
    %50 = vector.extract_strided_slice %44 {offsets = [0, 5], sizes = [8, 1], strides = [1, 1]} : vector<8x9xf32> to vector<8x1xf32>
    %51 = vector.extract_strided_slice %44 {offsets = [0, 6], sizes = [8, 1], strides = [1, 1]} : vector<8x9xf32> to vector<8x1xf32>
    %52 = vector.extract_strided_slice %44 {offsets = [0, 7], sizes = [8, 1], strides = [1, 1]} : vector<8x9xf32> to vector<8x1xf32>
    %53 = vector.extract_strided_slice %44 {offsets = [0, 8], sizes = [8, 1], strides = [1, 1]} : vector<8x9xf32> to vector<8x1xf32>
    %54 = tpu.concatenate %45, %46, %47, %48, %49, %50, %51, %52, %53 in 0 : vector<8x1xf32>, vector<8x1xf32>, vector<8x1xf32>, vector<8x1xf32>, vector<8x1xf32>, vector<8x1xf32>, vector<8x1xf32>, vector<8x1xf32>, vector<8x1xf32> -> vector<72x1xf32>
    %c0_12 = arith.constant 0 : index
    %c0_13 = arith.constant 0 : index
    %55 = vector.load %arg6[%c0_12, %c0_13] : memref<8x72xf32, #tpu.memory_space<vmem>>, vector<8x72xf32>
    %cst_14 = arith.constant dense<0.000000e+00> : vector<8x1xf32>
    %56 = tpu.matmul %55, %54, %cst_14 {dimension_numbers = #tpu.dot_dimension_numbers<[1], [0], [0], [1], [0, 0, 1, 1], [], []>} : vector<8x72xf32>, vector<72x1xf32>, vector<8x1xf32> -> vector<8x1xf32>
    %cst_15 = arith.constant 3.906250e-03 : f32
    %57 = vector.broadcast %cst_15 : f32 to vector<8x1xf32>
    %58 = arith.mulf %56, %57 : vector<8x1xf32>
    %c0_16 = arith.constant 0 : index
    %c0_17 = arith.constant 0 : index
    %59 = vector.load %arg7[%c0_16, %c0_17] : memref<8x1xf32, #tpu.memory_space<vmem>>, vector<8x1xf32>
    %60 = arith.addf %58, %59 : vector<8x1xf32>
    %c0_18 = arith.constant 0 : index
    %c0_19 = arith.constant 0 : index
    %61 = vector.load %arg8[%c0_18, %c0_19] : memref<2x8xf32, #tpu.memory_space<vmem>>, vector<2x8xf32>
    %cst_20 = arith.constant dense<0.000000e+00> : vector<2x1xf32>
    %62 = tpu.matmul %61, %60, %cst_20 {dimension_numbers = #tpu.dot_dimension_numbers<[1], [0], [0], [1], [0, 0, 1, 1], [], []>} : vector<2x8xf32>, vector<8x1xf32>, vector<2x1xf32> -> vector<2x1xf32>
    %c0_21 = arith.constant 0 : index
    %c0_22 = arith.constant 0 : index
    %63 = vector.load %arg9[%c0_21, %c0_22] : memref<2x1xf32, #tpu.memory_space<vmem>>, vector<2x1xf32>
    %64 = arith.addf %62, %63 : vector<2x1xf32>
    %cst_23 = arith.constant 0.000000e+00 : f32
    %65 = vector.broadcast %cst_23 : f32 to vector<2x1xf32>
    %66 = arith.maximumf %64, %65 : vector<2x1xf32>
    %c0_24 = arith.constant 0 : index
    %c0_25 = arith.constant 0 : index
    %67 = vector.load %arg10[%c0_24, %c0_25] : memref<8x2xf32, #tpu.memory_space<vmem>>, vector<8x2xf32>
    %cst_26 = arith.constant dense<0.000000e+00> : vector<8x1xf32>
    %68 = tpu.matmul %67, %66, %cst_26 {dimension_numbers = #tpu.dot_dimension_numbers<[1], [0], [0], [1], [0, 0, 1, 1], [], []>} : vector<8x2xf32>, vector<2x1xf32>, vector<8x1xf32> -> vector<8x1xf32>
    %c0_27 = arith.constant 0 : index
    %c0_28 = arith.constant 0 : index
    %69 = vector.load %arg11[%c0_27, %c0_28] : memref<8x1xf32, #tpu.memory_space<vmem>>, vector<8x1xf32>
    %70 = arith.addf %68, %69 : vector<8x1xf32>
    %71 = arith.negf %70 : vector<8x1xf32>
    %72 = math.exp %71 : vector<8x1xf32>
    %cst_29 = arith.constant 1.000000e+00 : f32
    %73 = vector.broadcast %cst_29 : f32 to vector<8x1xf32>
    %74 = arith.addf %73, %72 : vector<8x1xf32>
    %75 = arith.divf %73, %74 : vector<8x1xf32>
    %76 = arith.mulf %75, %60 : vector<8x1xf32>
    %77 = vector.broadcast %76 : vector<8x1xf32> to vector<8x256xf32>
    %78 = arith.addf %1, %77 : vector<8x256xf32>
    %c0_30 = arith.constant 0 : index
    %c0_31 = arith.constant 0 : index
    %c0_32 = arith.constant 0 : index
    %79 = vector.load %arg12[%c0_30, %c0_31, %c0_32] : memref<1x8x256xf32, #tpu.memory_space<vmem>>, vector<1x8x256xf32>
    %80 = vector.shape_cast %79 : vector<1x8x256xf32> to vector<8x256xf32>
    %81 = vector.shape_cast %78 : vector<8x256xf32> to vector<1x8x256xf32>
    tpu.vector_store %arg12[%c0_30, %c0_31, %c0_32], %81 {strides = array<i32>} : memref<1x8x256xf32, #tpu.memory_space<vmem>>, vector<1x8x256xf32>,
    return
  }
  func.func @transform_0(%arg0: i32) -> (i32, i32, i32) {
    %c0_i32 = arith.constant 0 : i32
    %c0_i32_0 = arith.constant 0 : i32
    %c0_i32_1 = arith.constant 0 : i32
    return %arg0, %c0_i32, %c0_i32_0 : i32, i32, i32
  }
  func.func @transform_1(%arg0: i32) -> (i32, i32) {
    %c0_i32 = arith.constant 0 : i32
    %c0_i32_0 = arith.constant 0 : i32
    %c0_i32_1 = arith.constant 0 : i32
    return %c0_i32, %c0_i32_0 : i32, i32
  }
  func.func @transform_2(%arg0: i32) -> (i32, i32) {
    %c0_i32 = arith.constant 0 : i32
    %c0_i32_0 = arith.constant 0 : i32
    %c0_i32_1 = arith.constant 0 : i32
    return %c0_i32, %c0_i32_0 : i32, i32
  }
  func.func @transform_3(%arg0: i32) -> (i32, i32) {
    %c0_i32 = arith.constant 0 : i32
    %c0_i32_0 = arith.constant 0 : i32
    %c0_i32_1 = arith.constant 0 : i32
    return %c0_i32, %c0_i32_0 : i32, i32
  }
  func.func @transform_4(%arg0: i32) -> (i32, i32) {
    %c0_i32 = arith.constant 0 : i32
    %c0_i32_0 = arith.constant 0 : i32
    %c0_i32_1 = arith.constant 0 : i32
    return %c0_i32, %c0_i32_0 : i32, i32
  }
  func.func @transform_5(%arg0: i32) -> (i32, i32) {
    %c0_i32 = arith.constant 0 : i32
    %c0_i32_0 = arith.constant 0 : i32
    %c0_i32_1 = arith.constant 0 : i32
    return %c0_i32, %c0_i32_0 : i32, i32
  }
  func.func @transform_6(%arg0: i32) -> (i32, i32) {
    %c0_i32 = arith.constant 0 : i32
    %c0_i32_0 = arith.constant 0 : i32
    %c0_i32_1 = arith.constant 0 : i32
    return %c0_i32, %c0_i32_0 : i32, i32
  }
  func.func @transform_7(%arg0: i32) -> (i32, i32) {
    %c0_i32 = arith.constant 0 : i32
    %c0_i32_0 = arith.constant 0 : i32
    %c0_i32_1 = arith.constant 0 : i32
    return %c0_i32, %c0_i32_0 : i32, i32
  }
  func.func @transform_8(%arg0: i32) -> (i32, i32) {
    %c0_i32 = arith.constant 0 : i32
    %c0_i32_0 = arith.constant 0 : i32
    %c0_i32_1 = arith.constant 0 : i32
    return %c0_i32, %c0_i32_0 : i32, i32
  }
  func.func @transform_9(%arg0: i32) -> (i32, i32) {
    %c0_i32 = arith.constant 0 : i32
    %c0_i32_0 = arith.constant 0 : i32
    %c0_i32_1 = arith.constant 0 : i32
    return %c0_i32, %c0_i32_0 : i32, i32
  }
  func.func @transform_10(%arg0: i32) -> (i32, i32) {
    %c0_i32 = arith.constant 0 : i32
    %c0_i32_0 = arith.constant 0 : i32
    %c0_i32_1 = arith.constant 0 : i32
    return %c0_i32, %c0_i32_0 : i32, i32
  }
  func.func @transform_11(%arg0: i32) -> (i32, i32, i32) {
    %c0_i32 = arith.constant 0 : i32
    %c0_i32_0 = arith.constant 0 : i32
    %c0_i32_1 = arith.constant 0 : i32
    return %arg0, %c0_i32, %c0_i32_0 : i32, i32, i32
  }
}

</mosaic_0001>

<llo_original>
// kernel: ca_layer_forward.1
$region0: #{ca_layer_forward.1}
  #allocation0 [shape = 'u32[]', space=smem, size = 0x4, offset = 0x4, fixed_abs, tag = 'smem constant byte address 0x4 - core index']
  #allocation1 [shape = 'u32[72,128]{1,0:T(1,128)}', space=vmem, size = 0x9000, scoped, tag = 'internal scratch']
  %s0 = inlined_call_operand.vmem [shape: f32[2,8,256], index: 0, kind: input, shape index: {}]
  %s1 = inlined_call_operand.vmem [shape: f32[9,256], index: 1, kind: input, shape index: {}]
  %s2 = inlined_call_operand.vmem [shape: f32[256,9], index: 2, kind: input, shape index: {}]
  %s3 = inlined_call_operand.vmem [shape: f32[8,72], index: 3, kind: input, shape index: {}]
  %s4 = inlined_call_operand.vmem [shape: f32[8,1], index: 4, kind: input, shape index: {}]
  %s5 = inlined_call_operand.vmem [shape: f32[8,72], index: 5, kind: input, shape index: {}]
  %s6 = inlined_call_operand.vmem [shape: f32[8,1], index: 6, kind: input, shape index: {}]
  %s7 = inlined_call_operand.vmem [shape: f32[2,8], index: 7, kind: input, shape index: {}]
  %s8 = inlined_call_operand.vmem [shape: f32[2,1], index: 8, kind: input, shape index: {}]
  %s9 = inlined_call_operand.vmem [shape: f32[8,2], index: 9, kind: input, shape index: {}]
  %s10 = inlined_call_operand.vmem [shape: f32[8,1], index: 10, kind: input, shape index: {}]
  %s11 = inlined_call_operand.vmem [shape: f32[2,8,256], index: 11, kind: output, shape index: {}]
  %s12 = sld [smem:[#allocation0]]
  $region77: #{ca_layer_forward.1} parent=0
    _
  %s14 = ssub.s32 1, %s12
  %s15 = scalar_select 0, %s14, %s12
  loop: start=0, step=1, limit=4
  $region2: #{ca_layer_forward.1} parent=0 // loop_pre_header
    _
  $region3: #{ca_layer_forward.1} parent=0 // loop_header
    %s17 = sphi 0, %s21
    %p18 = scmp.ge.s32.totalorder %s17, 4
    %s27 = sphi 0, %s29
    %s30 = sphi 0, %s27
    %s31 = sphi 0, %s30
    %s47 = sphi 0, %s31
    %s51 = sphi 0, %s51
    %s53 = sphi 0, %s51
    %s54 = sphi 0, %s53
    %s68 = sphi 0, %s54
    %s72 = sphi 0, %s72
    %s74 = sphi 0, %s72
    %s75 = sphi 0, %s74
    %s89 = sphi 0, %s75
    %s93 = sphi 0, %s93
    %s95 = sphi 0, %s93
    %s96 = sphi 0, %s95
    %s110 = sphi 0, %s96
    %s114 = sphi 0, %s114
    %s116 = sphi 0, %s114
    %s117 = sphi 0, %s116
    %s131 = sphi 0, %s117
    %s135 = sphi 0, %s135
    %s137 = sphi 0, %s135
    %s138 = sphi 0, %s137
    %s152 = sphi 0, %s138
    %s156 = sphi 0, %s156
    %s158 = sphi 0, %s156
    %s159 = sphi 0, %s158
    %s173 = sphi 0, %s159
    %s177 = sphi 0, %s177
    %s179 = sphi 0, %s177
    %s180 = sphi 0, %s179
    %s194 = sphi 0, %s180
    %s198 = sphi 0, %s198
    %s200 = sphi 0, %s198
    %s201 = sphi 0, %s200
    %s215 = sphi 0, %s201
    %s219 = sphi 0, %s219
    %s221 = sphi 0, %s219
    %s222 = sphi 0, %s221
    %s236 = sphi 0, %s222
    %s240 = sphi 0, %s240
    %s242 = sphi 0, %s240
    %s243 = sphi 0, %s242
    %s257 = sphi 0, %s243
    %s263 = sphi 0, %s265
    %s266 = sphi 0, %s263
    %s267 = sphi 0, %s266
    %s283 = sphi 0, %s267
  $region4: #{ca_layer_forward.1} parent=0 // loop_header_branch
    %20 = sbr.rel (%p18) target = $region8
  $region5: #{ca_layer_forward.1} parent=0 // loop_body
    %s22 = ssub.s32 %s17, 1
    %s23 = ssub.s32 %s17, 2
    %s24 = sadd.s32 %s17, 1
    %s25 = ssub.s32 %s17, %s24
    %p26 = scmp.eq.s32.totalorder %s25, 0
    %s28 = sadd.s32 %s27, 1
    %s29 = scalar_select %p26, %s27, %s28
    %p32 = pneg %p26
    %p33 = scmp.eq.s32.totalorder %s17, 1
    %p34 = por %p32, %p33
    %p35 = scmp.ne.s32.totalorder %s27, %s30
    %p36 = scmp.eq.s32.totalorder %s17, 0
    %p37 = por %p35, %p36
    %p38 = scmp.ne.s32.totalorder %s27, %s30
    %p39 = scmp.eq.s32.totalorder %s22, 1
    %p40 = por %p38, %p39
    %p41 = scmp.ne.s32.totalorder %s30, %s31
    %p42 = scmp.eq.s32.totalorder %s22, 0
    %p43 = por %p41, %p42
    %p44 = scmp.ne.s32.totalorder %s30, %s31
    %p45 = scmp.eq.s32.totalorder %s23, 1
    %p46 = por %p44, %p45
    %p48 = scmp.ne.s32.totalorder %s31, %s47
    %p49 = scmp.eq.s32.totalorder %s23, 0
    %p50 = por %p48, %p49
    %s52 = sadd.s32 %s51, 1
    %p55 = scmp.eq.s32.totalorder %s17, 1
    %p56 = scmp.ne.s32.totalorder %s51, %s53
    %p57 = scmp.eq.s32.totalorder %s17, 0
    %p58 = por %p56, %p57
    %p59 = scmp.ne.s32.totalorder %s51, %s53
    %p60 = scmp.eq.s32.totalorder %s22, 1
    %p61 = por %p59, %p60
    %p62 = scmp.ne.s32.totalorder %s53, %s54
    %p63 = scmp.eq.s32.totalorder %s22, 0
    %p64 = por %p62, %p63
    %p65 = scmp.ne.s32.totalorder %s53, %s54
    %p66 = scmp.eq.s32.totalorder %s23, 1
    %p67 = por %p65, %p66
    %p69 = scmp.ne.s32.totalorder %s54, %s68
    %p70 = scmp.eq.s32.totalorder %s23, 0
    %p71 = por %p69, %p70
    %s73 = sadd.s32 %s72, 1
    %p76 = scmp.eq.s32.totalorder %s17, 1
    %p77 = scmp.ne.s32.totalorder %s72, %s74
    %p78 = scmp.eq.s32.totalorder %s17, 0
    %p79 = por %p77, %p78
    %p80 = scmp.ne.s32.totalorder %s72, %s74
    %p81 = scmp.eq.s32.totalorder %s22, 1
    %p82 = por %p80, %p81
    %p83 = scmp.ne.s32.totalorder %s74, %s75
    %p84 = scmp.eq.s32.totalorder %s22, 0
    %p85 = por %p83, %p84
    %p86 = scmp.ne.s32.totalorder %s74, %s75
    %p87 = scmp.eq.s32.totalorder %s23, 1
    %p88 = por %p86, %p87
    %p90 = scmp.ne.s32.totalorder %s75, %s89
    %p91 = scmp.eq.s32.totalorder %s23, 0
    %p92 = por %p90, %p91
    %s94 = sadd.s32 %s93, 1
    %p97 = scmp.eq.s32.totalorder %s17, 1
    %p98 = scmp.ne.s32.totalorder %s93, %s95
    %p99 = scmp.eq.s32.totalorder %s17, 0
    %p100 = por %p98, %p99
    %p101 = scmp.ne.s32.totalorder %s93, %s95
    %p102 = scmp.eq.s32.totalorder %s22, 1
    %p103 = por %p101, %p102
    %p104 = scmp.ne.s32.totalorder %s95, %s96
    %p105 = scmp.eq.s32.totalorder %s22, 0
    %p106 = por %p104, %p105
    %p107 = scmp.ne.s32.totalorder %s95, %s96
    %p108 = scmp.eq.s32.totalorder %s23, 1
    %p109 = por %p107, %p108
    %p111 = scmp.ne.s32.totalorder %s96, %s110
    %p112 = scmp.eq.s32.totalorder %s23, 0
    %p113 = por %p111, %p112
    %s115 = sadd.s32 %s114, 1
    %p118 = scmp.eq.s32.totalorder %s17, 1
    %p119 = scmp.ne.s32.totalorder %s114, %s116
    %p120 = scmp.eq.s32.totalorder %s17, 0
    %p121 = por %p119, %p120
    %p122 = scmp.ne.s32.totalorder %s114, %s116
    %p123 = scmp.eq.s32.totalorder %s22, 1
    %p124 = por %p122, %p123
    %p125 = scmp.ne.s32.totalorder %s116, %s117
    %p126 = scmp.eq.s32.totalorder %s22, 0
    %p127 = por %p125, %p126
    %p128 = scmp.ne.s32.totalorder %s116, %s117
    %p129 = scmp.eq.s32.totalorder %s23, 1
    %p130 = por %p128, %p129
    %p132 = scmp.ne.s32.totalorder %s117, %s131
    %p133 = scmp.eq.s32.totalorder %s23, 0
    %p134 = por %p132, %p133
    %s136 = sadd.s32 %s135, 1
    %p139 = scmp.eq.s32.totalorder %s17, 1
    %p140 = scmp.ne.s32.totalorder %s135, %s137
    %p141 = scmp.eq.s32.totalorder %s17, 0
    %p142 = por %p140, %p141
    %p143 = scmp.ne.s32.totalorder %s135, %s137
    %p144 = scmp.eq.s32.totalorder %s22, 1
    %p145 = por %p143, %p144
    %p146 = scmp.ne.s32.totalorder %s137, %s138
    %p147 = scmp.eq.s32.totalorder %s22, 0
    %p148 = por %p146, %p147
    %p149 = scmp.ne.s32.totalorder %s137, %s138
    %p150 = scmp.eq.s32.totalorder %s23, 1
    %p151 = por %p149, %p150
    %p153 = scmp.ne.s32.totalorder %s138, %s152
    %p154 = scmp.eq.s32.totalorder %s23, 0
    %p155 = por %p153, %p154
    %s157 = sadd.s32 %s156, 1
    %p160 = scmp.eq.s32.totalorder %s17, 1
    %p161 = scmp.ne.s32.totalorder %s156, %s158
    %p162 = scmp.eq.s32.totalorder %s17, 0
    %p163 = por %p161, %p162
    %p164 = scmp.ne.s32.totalorder %s156, %s158
    %p165 = scmp.eq.s32.totalorder %s22, 1
    %p166 = por %p164, %p165
    %p167 = scmp.ne.s32.totalorder %s158, %s159
    %p168 = scmp.eq.s32.totalorder %s22, 0
    %p169 = por %p167, %p168
    %p170 = scmp.ne.s32.totalorder %s158, %s159
    %p171 = scmp.eq.s32.totalorder %s23, 1
    %p172 = por %p170, %p171
    %p174 = scmp.ne.s32.totalorder %s159, %s173
    %p175 = scmp.eq.s32.totalorder %s23, 0
    %p176 = por %p174, %p175
    %s178 = sadd.s32 %s177, 1
    %p181 = scmp.eq.s32.totalorder %s17, 1
    %p182 = scmp.ne.s32.totalorder %s177, %s179
    %p183 = scmp.eq.s32.totalorder %s17, 0
    %p184 = por %p182, %p183
    %p185 = scmp.ne.s32.totalorder %s177, %s179
    %p186 = scmp.eq.s32.totalorder %s22, 1
    %p187 = por %p185, %p186
    %p188 = scmp.ne.s32.totalorder %s179, %s180
    %p189 = scmp.eq.s32.totalorder %s22, 0
    %p190 = por %p188, %p189
    %p191 = scmp.ne.s32.totalorder %s179, %s180
    %p192 = scmp.eq.s32.totalorder %s23, 1
    %p193 = por %p191, %p192
    %p195 = scmp.ne.s32.totalorder %s180, %s194
    %p196 = scmp.eq.s32.totalorder %s23, 0
    %p197 = por %p195, %p196
    %s199 = sadd.s32 %s198, 1
    %p202 = scmp.eq.s32.totalorder %s17, 1
    %p203 = scmp.ne.s32.totalorder %s198, %s200
    %p204 = scmp.eq.s32.totalorder %s17, 0
    %p205 = por %p203, %p204
    %p206 = scmp.ne.s32.totalorder %s198, %s200
    %p207 = scmp.eq.s32.totalorder %s22, 1
    %p208 = por %p206, %p207
    %p209 = scmp.ne.s32.totalorder %s200, %s201
    %p210 = scmp.eq.s32.totalorder %s22, 0
    %p211 = por %p209, %p210
    %p212 = scmp.ne.s32.totalorder %s200, %s201
    %p213 = scmp.eq.s32.totalorder %s23, 1
    %p214 = por %p212, %p213
    %p216 = scmp.ne.s32.totalorder %s201, %s215
    %p217 = scmp.eq.s32.totalorder %s23, 0
    %p218 = por %p216, %p217
    %s220 = sadd.s32 %s219, 1
    %p223 = scmp.eq.s32.totalorder %s17, 1
    %p224 = scmp.ne.s32.totalorder %s219, %s221
    %p225 = scmp.eq.s32.totalorder %s17, 0
    %p226 = por %p224, %p225
    %p227 = scmp.ne.s32.totalorder %s219, %s221
    %p228 = scmp.eq.s32.totalorder %s22, 1
    %p229 = por %p227, %p228
    %p230 = scmp.ne.s32.totalorder %s221, %s222
    %p231 = scmp.eq.s32.totalorder %s22, 0
    %p232 = por %p230, %p231
    %p233 = scmp.ne.s32.totalorder %s221, %s222
    %p234 = scmp.eq.s32.totalorder %s23, 1
    %p235 = por %p233, %p234
    %p237 = scmp.ne.s32.totalorder %s222, %s236
    %p238 = scmp.eq.s32.totalorder %s23, 0
    %p239 = por %p237, %p238
    %s241 = sadd.s32 %s240, 1
    %p244 = scmp.eq.s32.totalorder %s17, 1
    %p245 = scmp.ne.s32.totalorder %s240, %s242
    %p246 = scmp.eq.s32.totalorder %s17, 0
    %p247 = por %p245, %p246
    %p248 = scmp.ne.s32.totalorder %s240, %s242
    %p249 = scmp.eq.s32.totalorder %s22, 1
    %p250 = por %p248, %p249
    %p251 = scmp.ne.s32.totalorder %s242, %s243
    %p252 = scmp.eq.s32.totalorder %s22, 0
    %p253 = por %p251, %p252
    %p254 = scmp.ne.s32.totalorder %s242, %s243
    %p255 = scmp.eq.s32.totalorder %s23, 1
    %p256 = por %p254, %p255
    %p258 = scmp.ne.s32.totalorder %s243, %s257
    %p259 = scmp.eq.s32.totalorder %s23, 0
    %p260 = por %p258, %p259
    %s261 = ssub.s32 %s17, %s24
    %p262 = scmp.eq.s32.totalorder %s261, 0
    %s264 = sadd.s32 %s263, 1
    %s265 = scalar_select %p262, %s263, %s264
    %p268 = pneg %p262
    %p269 = scmp.eq.s32.totalorder %s17, 1
    %p270 = por %p268, %p269
    %p271 = scmp.ne.s32.totalorder %s263, %s266
    %p272 = scmp.eq.s32.totalorder %s17, 0
    %p273 = por %p271, %p272
    %p274 = scmp.ne.s32.totalorder %s263, %s266
    %p275 = scmp.eq.s32.totalorder %s22, 1
    %p276 = por %p274, %p275
    %p277 = scmp.ne.s32.totalorder %s266, %s267
    %p278 = scmp.eq.s32.totalorder %s22, 0
    %p279 = por %p277, %p278
    %p280 = scmp.ne.s32.totalorder %s266, %s267
    %p281 = scmp.eq.s32.totalorder %s23, 1
    %p282 = por %p280, %p281
    %p284 = scmp.ne.s32.totalorder %s267, %s283
    %p285 = scmp.eq.s32.totalorder %s23, 0
    %p286 = por %p284, %p285
    %p287 = scmp.le.s32.totalorder 1, %s17
    %p288 = scmp.lt.s32.totalorder %s17, 3
    %p289 = pnand %p287, %p288
    %p290 = pneg %p289
    // Predicated region
    $region9: #{ca_layer_forward.1} parent=5 // pred_check
      _
    $region10: #{ca_layer_forward.1} parent=5 // pred_check_branch
      %292 = sbr.rel (%p289) target = $region12
    $region11: #{ca_layer_forward.1} parent=5 // pred_region
      %s293 = ssub.s32 %s17, 1
      // Predicated region
      $region13: #{ca_layer_forward.1} parent=11 // pred_check
        %p294 = pneg %p64
      $region14: #{ca_layer_forward.1} parent=11 // pred_check_branch
        %296 = sbr.rel (%p294) target = $region16
      $region15: #{ca_layer_forward.1} parent=11 // pred_region
        _
      $region16: #{ca_layer_forward.1} parent=11 // pred_fallthru
        _
      // Predicated region
      $region17: #{ca_layer_forward.1} parent=11 // pred_check
        %p297 = pneg %p85
      $region18: #{ca_layer_forward.1} parent=11 // pred_check_branch
        %299 = sbr.rel (%p297) target = $region20
      $region19: #{ca_layer_forward.1} parent=11 // pred_region
        _
      $region20: #{ca_layer_forward.1} parent=11 // pred_fallthru
        _
      // Predicated region
      $region21: #{ca_layer_forward.1} parent=11 // pred_check
        %p300 = pneg %p106
      $region22: #{ca_layer_forward.1} parent=11 // pred_check_branch
        %302 = sbr.rel (%p300) target = $region24
      $region23: #{ca_layer_forward.1} parent=11 // pred_region
        _
      $region24: #{ca_layer_forward.1} parent=11 // pred_fallthru
        _
      // Predicated region
      $region25: #{ca_layer_forward.1} parent=11 // pred_check
        %p303 = pneg %p127
      $region26: #{ca_layer_forward.1} parent=11 // pred_check_branch
        %305 = sbr.rel (%p303) target = $region28
      $region27: #{ca_layer_forward.1} parent=11 // pred_region
        _
      $region28: #{ca_layer_forward.1} parent=11 // pred_fallthru
        _
      // Predicated region
      $region29: #{ca_layer_forward.1} parent=11 // pred_check
        %p306 = pneg %p148
      $region30: #{ca_layer_forward.1} parent=11 // pred_check_branch
        %308 = sbr.rel (%p306) target = $region32
      $region31: #{ca_layer_forward.1} parent=11 // pred_region
        _
      $region32: #{ca_layer_forward.1} parent=11 // pred_fallthru
        _
      // Predicated region
      $region33: #{ca_layer_forward.1} parent=11 // pred_check
        %p309 = pneg %p169
      $region34: #{ca_layer_forward.1} parent=11 // pred_check_branch
        %311 = sbr.rel (%p309) target = $region36
      $region35: #{ca_layer_forward.1} parent=11 // pred_region
        _
      $region36: #{ca_layer_forward.1} parent=11 // pred_fallthru
        _
      // Predicated region
      $region37: #{ca_layer_forward.1} parent=11 // pred_check
        %p312 = pneg %p190
      $region38: #{ca_layer_forward.1} parent=11 // pred_check_branch
        %314 = sbr.rel (%p312) target = $region40
      $region39: #{ca_layer_forward.1} parent=11 // pred_region
        _
      $region40: #{ca_layer_forward.1} parent=11 // pred_fallthru
        _
      // Predicated region
      $region41: #{ca_layer_forward.1} parent=11 // pred_check
        %p315 = pneg %p211
      $region42: #{ca_layer_forward.1} parent=11 // pred_check_branch
        %317 = sbr.rel (%p315) target = $region44
      $region43: #{ca_layer_forward.1} parent=11 // pred_region
        _
      $region44: #{ca_layer_forward.1} parent=11 // pred_fallthru
        _
      // Predicated region
      $region45: #{ca_layer_forward.1} parent=11 // pred_check
        %p318 = pneg %p232
      $region46: #{ca_layer_forward.1} parent=11 // pred_check_branch
        %320 = sbr.rel (%p318) target = $region48
      $region47: #{ca_layer_forward.1} parent=11 // pred_region
        _
      $region48: #{ca_layer_forward.1} parent=11 // pred_fallthru
        _
      // Predicated region
      $region49: #{ca_layer_forward.1} parent=11 // pred_check
        %p321 = pneg %p253
      $region50: #{ca_layer_forward.1} parent=11 // pred_check_branch
        %323 = sbr.rel (%p321) target = $region52
      $region51: #{ca_layer_forward.1} parent=11 // pred_region
        _
      $region52: #{ca_layer_forward.1} parent=11 // pred_fallthru
        _
    $region12: #{ca_layer_forward.1} parent=5 // pred_fallthru
      _
    %p324 = scmp.lt.s32.totalorder %s17, 2
    // Predicated region
    $region53: #{ca_layer_forward.1} parent=5 // pred_check
      %p325 = pneg %p324
    $region54: #{ca_layer_forward.1} parent=5 // pred_check_branch
      %327 = sbr.rel (%p325) target = $region56
    $region55: #{ca_layer_forward.1} parent=5 // pred_region
      // Predicated region
      $region57: #{ca_layer_forward.1} parent=55 // pred_check
        %p328 = pneg %p37
      $region58: #{ca_layer_forward.1} parent=55 // pred_check_branch
        %330 = sbr.rel (%p328) target = $region60
      $region59: #{ca_layer_forward.1} parent=55 // pred_region
        %p331 = scmp.lt.s32.totalorder %s17, 1
        %s332 = scalar_select %p331, %s17, 1
        %s333 = smul.addr %s332, 2
        %s334 = smul.addr %s333, 8
        %s335 = scalar_lea.vmem %s0, %s334
      $region60: #{ca_layer_forward.1} parent=55 // pred_fallthru
        _
    $region56: #{ca_layer_forward.1} parent=5 // pred_fallthru
      _
    %p336 = scmp.le.s32.totalorder 1, %s17
    %p337 = scmp.lt.s32.totalorder %s17, 3
    %p338 = pnand %p336, %p337
    %p339 = pneg %p338
    // Predicated region
    $region61: #{ca_layer_forward.1} parent=5 // pred_check
      _
    $region62: #{ca_layer_forward.1} parent=5 // pred_check_branch
      %341 = sbr.rel (%p338) target = $region64
    $region63: #{ca_layer_forward.1} parent=5 // pred_region
      %s342 = ssub.s32 %s17, 1
      %p343 = scmp.lt.s32.totalorder %s22, 1
      %s344 = scalar_select %p343, %s22, 1
      %s345 = smul.addr %s344, 2
      %s346 = smul.addr %s345, 8
      %s347 = scalar_lea.vmem %s0, %s346
      %p348 = pneg %p43
      %p349 = pneg %p40
      %p350 = pneg %p64
      %p351 = pneg %p61
      %p352 = pneg %p85
      %p353 = pneg %p82
      %p354 = pneg %p106
      %p355 = pneg %p103
      %p356 = pneg %p127
      %p357 = pneg %p124
      %p358 = pneg %p148
      %p359 = pneg %p145
      %p360 = pneg %p169
      %p361 = pneg %p166
      %p362 = pneg %p190
      %p363 = pneg %p187
      %p364 = pneg %p211
      %p365 = pneg %p208
      %p366 = pneg %p232
      %p367 = pneg %p229
      %p368 = pneg %p253
      %p369 = pneg %p250
      %p370 = pneg %p279
      %p371 = pneg %p276
      %p372 = scmp.lt.s32.totalorder %s22, 1
      %s373 = scalar_select %p372, %s22, 1
      %s374 = smul.addr %s373, 2
      %s375 = smul.addr %s374, 8
      %s376 = scalar_lea.vmem %s11, %s375
      %p377 = scmp.lt.s32.totalorder %s22, 1
      %s378 = scalar_select %p377, %s22, 1
      %s379 = smul.addr %s378, 2
      %s380 = smul.addr %s379, 8
      %s381 = scalar_lea.vmem %s0, %s380
      %p382 = scmp.lt.s32.totalorder %s22, 1
      %s383 = scalar_select %p382, %s22, 1
      %s384 = smul.addr %s383, 2
      %s385 = smul.addr %s384, 8
      %s386 = scalar_lea.vmem %s11, %s385
      %v387 = vld [vmem:[%s381] sm:$0xff]
      %v388 = vld [vmem:[%s381 + $0x8] sm:$0xff]
      %v389 = vld [vmem:[%s1] sm:$0xff]
      %v390 = vld [vmem:[%s1 + $0x8] sm:$0xff]
      %v391 = vld [vmem:[%s1 + $0x10] sm:$0x1]
      %v392 = vld [vmem:[%s1 + $0x18] sm:$0x1]
      %393 = vrot.lane.b32.xlu0 %v387, 17
      %v394 = vpop.permute.xlu0 %393
      %395 = vrot.lane.b32.xlu0 %v388, 17
      %v396 = vpop.permute.xlu0 %395
      %v397 = vlaneseq
      %v398 = vand.u32 %v397, 127
      %vm399 = vcmp.lt.s32.totalorder %v398, 17
      %v400 = vsel %vm399, %v394, %v396
      %v401 = vsel %vm399, %v396, %v394
      %v402 = vperm.slane %v389, 0
      %v403 = vperm.slane %v390, 0
      %v404 = vmul.f32 %v401, %v402
      %v405 = vmul.f32 %v400, %v403
      %406 = vrot.lane.b32.xlu0 %v387, 16
      %v407 = vpop.permute.xlu0 %406
      %408 = vrot.lane.b32.xlu0 %v388, 16
      %v409 = vpop.permute.xlu0 %408
      %vm410 = vcmp.lt.s32.totalorder %v398, 16
      %v411 = vsel %vm410, %v407, %v409
      %v412 = vsel %vm410, %v409, %v407
      %v413 = vperm.slane %v389, 1
      %v414 = vperm.slane %v390, 1
      %v415 = vmul.f32 %v412, %v413
      %v416 = vmul.f32 %v411, %v414
      %417 = vrot.lane.b32.xlu0 %v387, 15
      %v418 = vpop.permute.xlu0 %417
      %419 = vrot.lane.b32.xlu0 %v388, 15
      %v420 = vpop.permute.xlu0 %419
      %vm421 = vcmp.lt.s32.totalorder %v398, 15
      %v422 = vsel %vm421, %v418, %v420
      %v423 = vsel %vm421, %v420, %v418
      %v424 = vperm.slane %v389, 2
      %v425 = vperm.slane %v390, 2
      %v426 = vmul.f32 %v423, %v424
      %v427 = vmul.f32 %v422, %v425
      %428 = vrot.lane.b32.xlu0 %v387, 1
      %v429 = vpop.permute.xlu0 %428
      %430 = vrot.lane.b32.xlu0 %v388, 1
      %v431 = vpop.permute.xlu0 %430
      %vm432 = vcmp.lt.s32.totalorder %v398, 1
      %v433 = vsel %vm432, %v429, %v431
      %v434 = vsel %vm432, %v431, %v429
      %v435 = vperm.slane %v389, 3
      %v436 = vperm.slane %v390, 3
      %v437 = vmul.f32 %v434, %v435
      %v438 = vmul.f32 %v433, %v436
      %439 = vrot.lane.b32.xlu0 %v387, 127
      %v440 = vpop.permute.xlu0 %439
      %441 = vrot.lane.b32.xlu0 %v388, 127
      %v442 = vpop.permute.xlu0 %441
      %vm443 = vcmp.lt.s32.totalorder %v398, 127
      %v444 = vsel %vm443, %v440, %v442
      %v445 = vsel %vm443, %v442, %v440
      %v446 = vperm.slane %v389, 5
      %v447 = vperm.slane %v390, 5
      %v448 = vmul.f32 %v444, %v446
      %v449 = vmul.f32 %v445, %v447
      %450 = vrot.lane.b32.xlu0 %v387, 113
      %v451 = vpop.permute.xlu0 %450
      %452 = vrot.lane.b32.xlu0 %v388, 113
      %v453 = vpop.permute.xlu0 %452
      %vm454 = vcmp.lt.s32.totalorder %v398, 113
      %v455 = vsel %vm454, %v451, %v453
      %v456 = vsel %vm454, %v453, %v451
      %v457 = vperm.slane %v389, 6
      %v458 = vperm.slane %v390, 6
      %v459 = vmul.f32 %v455, %v457
      %v460 = vmul.f32 %v456, %v458
      %461 = vrot.lane.b32.xlu0 %v387, 112
      %v462 = vpop.permute.xlu0 %461
      %463 = vrot.lane.b32.xlu0 %v388, 112
      %v464 = vpop.permute.xlu0 %463
      %vm465 = vcmp.lt.s32.totalorder %v398, 112
      %v466 = vsel %vm465, %v462, %v464
      %v467 = vsel %vm465, %v464, %v462
      %v468 = vperm.slane %v389, 7
      %v469 = vperm.slane %v390, 7
      %v470 = vmul.f32 %v466, %v468
      %v471 = vmul.f32 %v467, %v469
      %472 = vrot.lane.b32.xlu0 %v387, 111
      %v473 = vpop.permute.xlu0 %472
      %474 = vrot.lane.b32.xlu0 %v388, 111
      %v475 = vpop.permute.xlu0 %474
      %vm476 = vcmp.lt.s32.totalorder %v398, 111
      %v477 = vsel %vm476, %v473, %v475
      %v478 = vsel %vm476, %v475, %v473
      %v479 = vperm.slane %v391, 0
      %v480 = vperm.slane %v392, 0
      %v481 = vmul.f32 %v477, %v479
      %v482 = vmul.f32 %v478, %v480
      %v483 = vld [vmem:[%s3] sm:$0xff]
      %v484 = vld [vmem:[%s4] sm:$0xff]
      %486 = vset.pattern.permute.xlu0 0
      %487 = vperm.xlu0 %486, %v484
      %v488 = vpop.permute.xlu0 %487
      %vm490 = vcmask 588800
      %v492 = vsel %vm490, %v483, 0
      %494 = vmatpush.msra.mxu0 0.0
      %495 = vmatpush.msra.mxu0 0.0
      %496 = vmatpush.msra.mxu0 0.0
      %497 = vmatpush.msra.mxu0 0.0
      %498 = vmatpush.msra.mxu0 0.0
      %499 = vmatpush.msra.mxu0 0.0
      %500 = vmatpush.msra.mxu0 0.0
      %501 = vmatpush.msra.mxu0 %v481
      %502 = vmatpush.msra.mxu0 %v470
      %503 = vmatpush.msra.mxu0 %v459
      %504 = vmatpush.msra.mxu0 %v448
      %505 = vmatpush.msra.mxu0 %v387
      %506 = vmatpush.msra.mxu0 %v437
      %507 = vmatpush.msra.mxu0 %v426
      %508 = vmatpush.msra.mxu0 %v415
      %509 = vmatpush.msra.mxu0 %v404
      %510 = vmatmul.f32.gmra.mxu0 %v492
      %v511 = vpop.f32.mrf.mxu0
      %v512 = vadd.f32 %v488, %v511
      %513 = vdwg.mxu0
      %514 = vmatpush.msra.mxu0 0.0
      %515 = vmatpush.msra.mxu0 0.0
      %516 = vmatpush.msra.mxu0 0.0
      %517 = vmatpush.msra.mxu0 0.0
      %518 = vmatpush.msra.mxu0 0.0
      %519 = vmatpush.msra.mxu0 0.0
      %520 = vmatpush.msra.mxu0 0.0
      %521 = vmatpush.msra.mxu0 %v482
      %522 = vmatpush.msra.mxu0 %v471
      %523 = vmatpush.msra.mxu0 %v460
      %524 = vmatpush.msra.mxu0 %v449
      %525 = vmatpush.msra.mxu0 %v388
      %526 = vmatpush.msra.mxu0 %v438
      %527 = vmatpush.msra.mxu0 %v427
      %528 = vmatpush.msra.mxu0 %v416
      %529 = vmatpush.msra.mxu0 %v405
      %530 = vmatmul.f32.gmra.mxu0 %v492
      %v531 = vpop.f32.mrf.mxu0
      %v532 = vadd.f32 %v488, %v531
      %533 = vdwg.mxu0
      %v534 = vmax.f32 %v512, 0.0
      %v535 = vmax.f32 %v532, 0.0
      %v536 = vld [vmem:[%s2] sm:$0xff]
      %v537 = vld [vmem:[%s2 + $0x8] sm:$0xff]
      %v538 = vld [vmem:[%s2 + $0x10] sm:$0xff]
      %v539 = vld [vmem:[%s2 + $0x18] sm:$0xff]
      %v540 = vld [vmem:[%s2 + $0x20] sm:$0xff]
      %v541 = vld [vmem:[%s2 + $0x28] sm:$0xff]
      %v542 = vld [vmem:[%s2 + $0x30] sm:$0xff]
      %v543 = vld [vmem:[%s2 + $0x38] sm:$0xff]
      %v544 = vld [vmem:[%s2 + $0x40] sm:$0xff]
      %v545 = vld [vmem:[%s2 + $0x48] sm:$0xff]
      %v546 = vld [vmem:[%s2 + $0x50] sm:$0xff]
      %v547 = vld [vmem:[%s2 + $0x58] sm:$0xff]
      %v548 = vld [vmem:[%s2 + $0x60] sm:$0xff]
      %v549 = vld [vmem:[%s2 + $0x68] sm:$0xff]
      %v550 = vld [vmem:[%s2 + $0x70] sm:$0xff]
      %v551 = vld [vmem:[%s2 + $0x78] sm:$0xff]
      %v552 = vld [vmem:[%s2 + $0x80] sm:$0xff]
      %v553 = vld [vmem:[%s2 + $0x88] sm:$0xff]
      %v554 = vld [vmem:[%s2 + $0x90] sm:$0xff]
      %v555 = vld [vmem:[%s2 + $0x98] sm:$0xff]
      %v556 = vld [vmem:[%s2 + $0xa0] sm:$0xff]
      %v557 = vld [vmem:[%s2 + $0xa8] sm:$0xff]
      %v558 = vld [vmem:[%s2 + $0xb0] sm:$0xff]
      %v559 = vld [vmem:[%s2 + $0xb8] sm:$0xff]
      %v560 = vld [vmem:[%s2 + $0xc0] sm:$0xff]
      %v561 = vld [vmem:[%s2 + $0xc8] sm:$0xff]
      %v562 = vld [vmem:[%s2 + $0xd0] sm:$0xff]
      %v563 = vld [vmem:[%s2 + $0xd8] sm:$0xff]
      %v564 = vld [vmem:[%s2 + $0xe0] sm:$0xff]
      %v565 = vld [vmem:[%s2 + $0xe8] sm:$0xff]
      %v566 = vld [vmem:[%s2 + $0xf0] sm:$0xff]
      %v567 = vld [vmem:[%s2 + $0xf8] sm:$0xff]
      %568 = vmatpush.msra.mxu0 %v551
      %569 = vmatpush.msra.mxu0 %v550
      %570 = vmatpush.msra.mxu0 %v549
      %571 = vmatpush.msra.mxu0 %v548
      %572 = vmatpush.msra.mxu0 %v547
      %573 = vmatpush.msra.mxu0 %v546
      %574 = vmatpush.msra.mxu0 %v545
      %575 = vmatpush.msra.mxu0 %v544
      %576 = vmatpush.msra.mxu0 %v543
      %577 = vmatpush.msra.mxu0 %v542
      %578 = vmatpush.msra.mxu0 %v541
      %579 = vmatpush.msra.mxu0 %v540
      %580 = vmatpush.msra.mxu0 %v539
      %581 = vmatpush.msra.mxu0 %v538
      %582 = vmatpush.msra.mxu0 %v537
      %583 = vmatpush.msra.mxu0 %v536
      %584 = vmatmul.f32.gmra.mxu0 %v534
      %v585 = vpop.f32.mrf.mxu0
      %v586 = vadd.f32 0.0, %v585
      %587 = vdwg.mxu0
      %588 = vmatpush.msra.mxu0 %v567
      %589 = vmatpush.msra.mxu0 %v566
      %590 = vmatpush.msra.mxu0 %v565
      %591 = vmatpush.msra.mxu0 %v564
      %592 = vmatpush.msra.mxu0 %v563
      %593 = vmatpush.msra.mxu0 %v562
      %594 = vmatpush.msra.mxu0 %v561
      %595 = vmatpush.msra.mxu0 %v560
      %596 = vmatpush.msra.mxu0 %v559
      %597 = vmatpush.msra.mxu0 %v558
      %598 = vmatpush.msra.mxu0 %v557
      %599 = vmatpush.msra.mxu0 %v556
      %600 = vmatpush.msra.mxu0 %v555
      %601 = vmatpush.msra.mxu0 %v554
      %602 = vmatpush.msra.mxu0 %v553
      %603 = vmatpush.msra.mxu0 %v552
      %604 = vmatmul.f32.gmra.mxu0 %v535
      %v605 = vpop.f32.mrf.mxu0
      %v606 = vadd.f32 %v586, %v605
      %607 = vdwg.mxu0
      %609 = vrot.lane.b32.xlu0 %v606, 127
      %v610 = vpop.permute.xlu0 %609
      %612 = vrot.lane.b32.xlu0 %v606, 126
      %v613 = vpop.permute.xlu0 %612
      %615 = vrot.lane.b32.xlu0 %v606, 125
      %v616 = vpop.permute.xlu0 %615
      %618 = vrot.lane.b32.xlu0 %v606, 124
      %v619 = vpop.permute.xlu0 %618
      %621 = vrot.lane.b32.xlu0 %v606, 123
      %v622 = vpop.permute.xlu0 %621
      %624 = vrot.lane.b32.xlu0 %v606, 122
      %v625 = vpop.permute.xlu0 %624
      %627 = vrot.lane.b32.xlu0 %v606, 121
      %v628 = vpop.permute.xlu0 %627
      %630 = vrot.lane.b32.xlu0 %v606, 120
      %v631 = vpop.permute.xlu0 %630
      %v633 = vld [vmem:[%s5] sm:$0xff]
      %v635 = vsel %vm490, %v633, 0
      %637 = vmatpush.msra.mxu0 0.0
      %638 = vmatpush.msra.mxu0 0.0
      %639 = vmatpush.msra.mxu0 0.0
      %640 = vmatpush.msra.mxu0 0.0
      %641 = vmatpush.msra.mxu0 0.0
      %642 = vmatpush.msra.mxu0 0.0
      %643 = vmatpush.msra.mxu0 0.0
      %644 = vmatpush.msra.mxu0 %v631
      %645 = vmatpush.msra.mxu0 %v628
      %646 = vmatpush.msra.mxu0 %v625
      %647 = vmatpush.msra.mxu0 %v622
      %648 = vmatpush.msra.mxu0 %v619
      %649 = vmatpush.msra.mxu0 %v616
      %650 = vmatpush.msra.mxu0 %v613
      %651 = vmatpush.msra.mxu0 %v610
      %652 = vmatpush.msra.mxu0 %v606
      %653 = vmatmul.f32.gmra.mxu0 %v635
      %v654 = vpop.f32.mrf.mxu0
      %v655 = vadd.f32 0.0, %v654
      %656 = vdwg.mxu0
      %v657 = vmul.f32 %v655, 0.00390625
      %v658 = vld [vmem:[%s6] sm:$0xff]
      %v659 = vadd.f32 %v657, %v658
      %v660 = vld [vmem:[%s7] sm:$0x3]
      %v661 = vld [vmem:[%s8] sm:$0x3]
      %vm662 = vcmask 64512
      %v664 = vsel %vm662, %v660, 0
      %666 = vmatpush.msra.mxu0 0.0
      %667 = vmatpush.msra.mxu0 0.0
      %668 = vmatpush.msra.mxu0 0.0
      %669 = vmatpush.msra.mxu0 0.0
      %670 = vmatpush.msra.mxu0 0.0
      %671 = vmatpush.msra.mxu0 0.0
      %672 = vmatpush.msra.mxu0 0.0
      %673 = vmatpush.msra.mxu0 0.0
      %674 = vmatpush.msra.mxu0 0.0
      %675 = vmatpush.msra.mxu0 0.0
      %676 = vmatpush.msra.mxu0 0.0
      %677 = vmatpush.msra.mxu0 0.0
      %678 = vmatpush.msra.mxu0 0.0
      %679 = vmatpush.msra.mxu0 0.0
      %680 = vmatpush.msra.mxu0 0.0
      %681 = vmatpush.msra.mxu0 %v659
      %682 = vmatmul.f32.gmra.mxu0 %v664
      %v683 = vpop.f32.mrf.mxu0
      %v684 = vadd.f32 %v661, %v683
      %685 = vdwg.mxu0
      %v686 = vmax.f32 %v684, 0.0
      %v687 = vld [vmem:[%s9] sm:$0xff]
      %v688 = vld [vmem:[%s10] sm:$0xff]
      %vm689 = vcmask 15360
      %v691 = vsel %vm689, %v687, 0
      %vm693 = vcmask 1041408
      %v695 = vsel %vm693, %v686, 0
      %697 = vmatpush.msra.mxu0 0.0
      %698 = vmatpush.msra.mxu0 0.0
      %699 = vmatpush.msra.mxu0 0.0
      %700 = vmatpush.msra.mxu0 0.0
      %701 = vmatpush.msra.mxu0 0.0
      %702 = vmatpush.msra.mxu0 0.0
      %703 = vmatpush.msra.mxu0 0.0
      %704 = vmatpush.msra.mxu0 0.0
      %705 = vmatpush.msra.mxu0 0.0
      %706 = vmatpush.msra.mxu0 0.0
      %707 = vmatpush.msra.mxu0 0.0
      %708 = vmatpush.msra.mxu0 0.0
      %709 = vmatpush.msra.mxu0 0.0
      %710 = vmatpush.msra.mxu0 0.0
      %711 = vmatpush.msra.mxu0 0.0
      %712 = vmatpush.msra.mxu0 %v695
      %713 = vmatmul.f32.gmra.mxu0 %v691
      %v714 = vpop.f32.mrf.mxu0
      %v715 = vadd.f32 %v688, %v714
      %716 = vdwg.mxu0
      %v717 = vxor.u32 %v715, 2147483648
      %v718 = vmul.f32 %v717, 1.442695
      %v719 = vpow.pop %v718
      %v720 = vadd.f32 %v719, 1.0
      %v721 = vrcp.pop %v720
      %v722 = vmul.f32 %v720, %v721
      %v723 = vsub.f32 1.0, %v722
      %v724 = vmul.f32 %v721, %v723
      %v725 = vadd.f32 %v721, %v724
      %vm726 = vweird.f32 %v720
      %vm727 = vweird.f32 %v721
      %vm728 = vmor %vm726, %vm727
      %v729 = vsel %vm728, %v721, %v725
      %v730 = vand.u32 2147483647, %v720
      %vm731 = vcmp.eq.f32.partialorder %v730, 8.507059e+37
      %v732 = vand.u32 %v720, 2147483648
      %v733 = vor.u32 1.1754944e-38, %v732
      %v734 = vsel %vm731, %v733, %v729
      %v735 = vmul.f32 1.0, %v734
      %v736 = vmul.f32 %v735, %v659
      %738 = vset.pattern.permute.xlu0 0
      %739 = vperm.xlu0 %738, %v736
      %v740 = vpop.permute.xlu0 %739
      %v742 = vadd.f32 %v387, %v740
      %v743 = vadd.f32 %v388, %v740
      %744 = vst [vmem:[%s386] sm:$0xff] %v742
      %745 = vst [vmem:[%s386 + $0x8] sm:$0xff] %v743
      %p746 = scmp.lt.s32.totalorder %s22, 1
      %s747 = scalar_select %p746, %s22, 1
      %s748 = smul.addr %s747, 2
      %s749 = smul.addr %s748, 8
      %s750 = scalar_lea.vmem %s11, %s749
      // Predicated region
      $region65: #{ca_layer_forward.1} parent=63 // pred_check
        %p751 = pneg %p276
      $region66: #{ca_layer_forward.1} parent=63 // pred_check_branch
        %753 = sbr.rel (%p751) target = $region68
      $region67: #{ca_layer_forward.1} parent=63 // pred_region
        _
      $region68: #{ca_layer_forward.1} parent=63 // pred_fallthru
        _
    $region64: #{ca_layer_forward.1} parent=5 // pred_fallthru
      _
    %p754 = scmp.le.s32.totalorder 2, %s17
    // Predicated region
    $region69: #{ca_layer_forward.1} parent=5 // pred_check
      %p755 = pneg %p754
    $region70: #{ca_layer_forward.1} parent=5 // pred_check_branch
      %757 = sbr.rel (%p755) target = $region72
    $region71: #{ca_layer_forward.1} parent=5 // pred_region
      %s758 = ssub.s32 %s17, 2
      // Predicated region
      $region73: #{ca_layer_forward.1} parent=71 // pred_check
        %p759 = pneg %p282
      $region74: #{ca_layer_forward.1} parent=71 // pred_check_branch
        %761 = sbr.rel (%p759) target = $region76
      $region75: #{ca_layer_forward.1} parent=71 // pred_region
        %p762 = scmp.lt.s32.totalorder %s23, 1
        %s763 = scalar_select %p762, %s23, 1
        %s764 = smul.addr %s763, 2
        %s765 = smul.addr %s764, 8
        %s766 = scalar_lea.vmem %s11, %s765
      $region76: #{ca_layer_forward.1} parent=71 // pred_fallthru
        _
    $region72: #{ca_layer_forward.1} parent=5 // pred_fallthru
      _
  $region6: #{ca_layer_forward.1} parent=0 // loop_footer
    %s21 = sadd.s32 1, %s17
  $region7: #{ca_layer_forward.1} parent=0 // loop_footer_branch
    %16 = sbr.rel target = $region3
  $region8: #{ca_layer_forward.1} parent=0 // loop_exit
    _

</llo_original>
